<compile_context>
chip_gen: v7x
topology: tpu7x:2x2x1
jax: 0.10.0
libtpu: 0.0.40
codegen_flags: <defaults>
</compile_context>

<pallas_src>
import functools

import jax
import jax.numpy as jnp
from jax.experimental import pallas as pl
from jax.experimental.pallas import tpu as pltpu

F_PAD = 128  # lane-dense padded feature width (vreg lane width)


def _sage_fused_kernel(adjn_ref, h_ref, w_ref, b_ref, o_ref, *, num_layers):
    """All GraphSAGE layers fused, fully resident in VMEM.

    adjn_ref: (N, N)            f32  pre-normalized adjacency  (A + I) * 1/in_degree
    h_ref:    (N, F_PAD)        f32  zero-padded input node features
    w_ref:    (L, F_PAD, F_PAD) f32  per-layer linear weights, pre-transposed, zero-padded
    b_ref:    (L, 1, F_PAD)     f32  per-layer biases, zero-padded
    o_ref:    (N, F_PAD)        f32  lane-dense output slab (valid cols sliced by wrapper)
    """
    adjn = adjn_ref[...]
    h = h_ref[...]
    for layer in range(num_layers):                      # static unroll
        # mean aggregation: ((A + I) / deg) @ h        (MXU)
        agg = jnp.dot(adjn, h, preferred_element_type=jnp.float32)
        # linear layer                                  (MXU) + bias
        h = jnp.dot(agg, w_ref[layer], preferred_element_type=jnp.float32) + b_ref[layer]
        if layer < num_layers - 1:                       # last layer has activation=None
            h = jnp.maximum(h, 0.0)
    o_ref[...] = h


@jax.jit
def graphsage_forward_padded(adj_norm, features, w_stack, b_stack):
    """Jitted forward. Returns the lane-dense (N, F_PAD) output slab."""
    n, f_in = features.shape
    num_layers = w_stack.shape[0]

    # zero-pad features to the lane-dense width once (padding cols stay zero through layers)
    h0 = jnp.zeros((n, F_PAD), jnp.float32).at[:, :f_in].set(features)

    kernel = functools.partial(_sage_fused_kernel, num_layers=num_layers)
    return pl.pallas_call(
        kernel,
        out_shape=jax.ShapeDtypeStruct((n, F_PAD), jnp.float32),
        in_specs=[
            pl.BlockSpec((n, n), lambda: (0, 0)),
            pl.BlockSpec((n, F_PAD), lambda: (0, 0)),
            pl.BlockSpec((num_layers, F_PAD, F_PAD), lambda: (0, 0, 0)),
            pl.BlockSpec((num_layers, 1, F_PAD), lambda: (0, 0, 0)),
        ],
        out_specs=pl.BlockSpec((n, F_PAD), lambda: (0, 0)),
        compiler_params=pltpu.CompilerParams(vmem_limit_bytes=32 << 20),
    )(adj_norm, h0, w_stack, b_stack)


def graphsage_forward(adj_norm, features, w_stack, b_stack, n_classes):
    out = graphsage_forward_padded(adj_norm, features, w_stack, b_stack)
    return out[:, :n_classes]


def normalize_adjacency(adj):
    """Fold self-loop + mean normalization into the adjacency: (A + I) * 1/in_degree.

    Algebraically identical to (A @ h + h) * 1/deg. Zero in-degree guarded to 0
    (the test graph guarantees in-degree >= 1, matching the DGL update semantics)."""
    n = adj.shape[0]
    deg = jnp.sum(adj, axis=1, keepdims=True)            # in-degree per node
    inv_deg = jnp.where(deg > 0, 1.0 / deg, 0.0)
    return (adj + jnp.eye(n, dtype=adj.dtype)) * inv_deg


def xavier_uniform_relu(key, out_feats, in_feats):
    """nn.init.xavier_uniform_ with gain = calculate_gain('relu') = sqrt(2)."""
    gain = jnp.sqrt(2.0)
    bound = gain * jnp.sqrt(6.0 / (in_feats + out_feats))
    return jax.random.uniform(key, (out_feats, in_feats), jnp.float32, -bound, bound)


def linear_bias_default(key, in_feats, out_feats):
    """nn.Linear default bias init: U(-1/sqrt(fan_in), 1/sqrt(fan_in))."""
    bound = 1.0 / jnp.sqrt(jnp.float32(in_feats))
    return jax.random.uniform(key, (out_feats,), jnp.float32, -bound, bound)


def build_graphsage_params(key, in_feats, n_hidden, n_classes, n_layers):
    """Layer dims mirror GraphSAGE.__init__:
       [in->hidden] + (n_layers-1)*[hidden->hidden] + [hidden->classes].
       Returns lane-padded, pre-transposed stacked params for the kernel plus raw params
       (for the pure-JAX reference)."""
    dims = [(in_feats, n_hidden)]
    for _ in range(n_layers - 1):
        dims.append((n_hidden, n_hidden))
    dims.append((n_hidden, n_classes))

    num_layers = len(dims)
    w_stack = jnp.zeros((num_layers, F_PAD, F_PAD), jnp.float32)
    b_stack = jnp.zeros((num_layers, 1, F_PAD), jnp.float32)
    raw_params = []
    for i, (fi, fo) in enumerate(dims):
        key, kw, kb = jax.random.split(key, 3)
        w = xavier_uniform_relu(kw, fo, fi)               # (out, in) like nn.Linear.weight
        b = linear_bias_default(kb, fi, fo)               # (out,)
        apply_relu = i < num_layers - 1                   # last layer has activation=None
        raw_params.append((w, b, apply_relu))
        w_stack = w_stack.at[i, :fi, :fo].set(jnp.transpose(w))   # pre-transposed + padded
        b_stack = b_stack.at[i, 0, :fo].set(b)
    return w_stack, b_stack, raw_params


def reference_forward(adj, features, raw_params):
    """Pure-JAX reference matching the PyTorch module semantics."""
    deg = jnp.sum(adj, axis=1, keepdims=True)
    inv_deg = jnp.where(deg > 0, 1.0 / deg, 0.0)
    h = features
    for (w, b, apply_relu) in raw_params:
        agg = (adj @ h + h) * inv_deg
        h = agg @ w.T + b[None, :]
        if apply_relu:
            h = jnp.maximum(h, 0.0)
    return h


if __name__ == "__main__":
    N = 64          # number of nodes
    IN_FEATS = 32
    N_HIDDEN = 32
    N_CLASSES = 8
    N_LAYERS = 2    # -> 3 GraphSAGE layers total

    key = jax.random.PRNGKey(0)
    k_feat, k_adj, k_param = jax.random.split(key, 3)

    # deterministic node features
    features = jax.random.normal(k_feat, (N, IN_FEATS), jnp.float32)

    # deterministic random directed graph; force every node to have >=1 in-neighbor
    rand = jax.random.uniform(k_adj, (N, N), jnp.float32)
    adj = (rand < 0.1).astype(jnp.float32)
    adj = adj * (1.0 - jnp.eye(N, dtype=jnp.float32))          # no self loops in adjacency
    ring = jnp.roll(jnp.eye(N, dtype=jnp.float32), 1, axis=1)  # guarantee in-degree >= 1
    adj = jnp.maximum(adj, ring)

    w_stack, b_stack, raw_params = build_graphsage_params(
        k_param, IN_FEATS, N_HIDDEN, N_CLASSES, N_LAYERS)
    adj_norm = normalize_adjacency(adj)

    out = graphsage_forward(adj_norm, features, w_stack, b_stack, N_CLASSES)
    out = jax.block_until_ready(out)

    ref = reference_forward(adj, features, raw_params)
    assert out.shape == (N, N_CLASSES)
    assert jnp.allclose(out, ref, atol=1e-4, rtol=1e-4), "mismatch vs. pure-JAX reference"

    print("KERNEL_OK")
</pallas_src>

<mosaic_0001>
module attributes {stable_mosaic.version = 11 : i64} {
  func.func @_sage_fused_kernel(%arg0: memref<64x64xf32, #tpu.memory_space<vmem>>, %arg1: memref<64x128xf32, #tpu.memory_space<vmem>>, %arg2: memref<3x128x128xf32, #tpu.memory_space<vmem>>, %arg3: memref<3x1x128xf32, #tpu.memory_space<vmem>>, %arg4: memref<64x128xf32, #tpu.memory_space<vmem>>) attributes {dimension_semantics = [], scalar_prefetch = 0 : i64, scratch_operands = 0 : i64, tpu.core_type = #tpu.core_type<tc>} {
    %c0 = arith.constant 0 : index
    %c0_0 = arith.constant 0 : index
    %0 = vector.load %arg0[%c0, %c0_0] : memref<64x64xf32, #tpu.memory_space<vmem>>, vector<64x64xf32>
    %c0_1 = arith.constant 0 : index
    %c0_2 = arith.constant 0 : index
    %1 = vector.load %arg1[%c0_1, %c0_2] : memref<64x128xf32, #tpu.memory_space<vmem>>, vector<64x128xf32>
    %cst = arith.constant dense<0.000000e+00> : vector<64x128xf32>
    %2 = tpu.matmul %0, %1, %cst {dimension_numbers = #tpu.dot_dimension_numbers<[1], [0], [0], [1], [0, 0, 1, 1], [], []>} : vector<64x64xf32>, vector<64x128xf32>, vector<64x128xf32> -> vector<64x128xf32>
    %c0_3 = arith.constant 0 : index
    %c0_4 = arith.constant 0 : index
    %c0_5 = arith.constant 0 : index
    %3 = vector.load %arg2[%c0_3, %c0_4, %c0_5] : memref<3x128x128xf32, #tpu.memory_space<vmem>>, vector<1x128x128xf32>
    %4 = vector.shape_cast %3 : vector<1x128x128xf32> to vector<128x128xf32>
    %cst_6 = arith.constant dense<0.000000e+00> : vector<64x128xf32>
    %5 = tpu.matmul %2, %4, %cst_6 {dimension_numbers = #tpu.dot_dimension_numbers<[1], [0], [0], [1], [0, 0, 1, 1], [], []>} : vector<64x128xf32>, vector<128x128xf32>, vector<64x128xf32> -> vector<64x128xf32>
    %c0_7 = arith.constant 0 : index
    %c0_8 = arith.constant 0 : index
    %c0_9 = arith.constant 0 : index
    %6 = vector.load %arg3[%c0_7, %c0_8, %c0_9] : memref<3x1x128xf32, #tpu.memory_space<vmem>>, vector<1x1x128xf32>
    %7 = vector.shape_cast %6 : vector<1x1x128xf32> to vector<1x128xf32>
    %8 = vector.broadcast %7 : vector<1x128xf32> to vector<64x128xf32>
    %9 = arith.addf %5, %8 : vector<64x128xf32>
    %cst_10 = arith.constant 0.000000e+00 : f32
    %10 = vector.broadcast %cst_10 : f32 to vector<64x128xf32>
    %11 = arith.maximumf %9, %10 : vector<64x128xf32>
    %cst_11 = arith.constant dense<0.000000e+00> : vector<64x128xf32>
    %12 = tpu.matmul %0, %11, %cst_11 {dimension_numbers = #tpu.dot_dimension_numbers<[1], [0], [0], [1], [0, 0, 1, 1], [], []>} : vector<64x64xf32>, vector<64x128xf32>, vector<64x128xf32> -> vector<64x128xf32>
    %c1 = arith.constant 1 : index
    %c0_12 = arith.constant 0 : index
    %c0_13 = arith.constant 0 : index
    %13 = vector.load %arg2[%c1, %c0_12, %c0_13] : memref<3x128x128xf32, #tpu.memory_space<vmem>>, vector<1x128x128xf32>
    %14 = vector.shape_cast %13 : vector<1x128x128xf32> to vector<128x128xf32>
    %cst_14 = arith.constant dense<0.000000e+00> : vector<64x128xf32>
    %15 = tpu.matmul %12, %14, %cst_14 {dimension_numbers = #tpu.dot_dimension_numbers<[1], [0], [0], [1], [0, 0, 1, 1], [], []>} : vector<64x128xf32>, vector<128x128xf32>, vector<64x128xf32> -> vector<64x128xf32>
    %c1_15 = arith.constant 1 : index
    %c0_16 = arith.constant 0 : index
    %c0_17 = arith.constant 0 : index
    %16 = vector.load %arg3[%c1_15, %c0_16, %c0_17] : memref<3x1x128xf32, #tpu.memory_space<vmem>>, vector<1x1x128xf32>
    %17 = vector.shape_cast %16 : vector<1x1x128xf32> to vector<1x128xf32>
    %18 = vector.broadcast %17 : vector<1x128xf32> to vector<64x128xf32>
    %19 = arith.addf %15, %18 : vector<64x128xf32>
    %cst_18 = arith.constant 0.000000e+00 : f32
    %20 = vector.broadcast %cst_18 : f32 to vector<64x128xf32>
    %21 = arith.maximumf %19, %20 : vector<64x128xf32>
    %cst_19 = arith.constant dense<0.000000e+00> : vector<64x128xf32>
    %22 = tpu.matmul %0, %21, %cst_19 {dimension_numbers = #tpu.dot_dimension_numbers<[1], [0], [0], [1], [0, 0, 1, 1], [], []>} : vector<64x64xf32>, vector<64x128xf32>, vector<64x128xf32> -> vector<64x128xf32>
    %c2 = arith.constant 2 : index
    %c0_20 = arith.constant 0 : index
    %c0_21 = arith.constant 0 : index
    %23 = vector.load %arg2[%c2, %c0_20, %c0_21] : memref<3x128x128xf32, #tpu.memory_space<vmem>>, vector<1x128x128xf32>
    %24 = vector.shape_cast %23 : vector<1x128x128xf32> to vector<128x128xf32>
    %cst_22 = arith.constant dense<0.000000e+00> : vector<64x128xf32>
    %25 = tpu.matmul %22, %24, %cst_22 {dimension_numbers = #tpu.dot_dimension_numbers<[1], [0], [0], [1], [0, 0, 1, 1], [], []>} : vector<64x128xf32>, vector<128x128xf32>, vector<64x128xf32> -> vector<64x128xf32>
    %c2_23 = arith.constant 2 : index
    %c0_24 = arith.constant 0 : index
    %c0_25 = arith.constant 0 : index
    %26 = vector.load %arg3[%c2_23, %c0_24, %c0_25] : memref<3x1x128xf32, #tpu.memory_space<vmem>>, vector<1x1x128xf32>
    %27 = vector.shape_cast %26 : vector<1x1x128xf32> to vector<1x128xf32>
    %28 = vector.broadcast %27 : vector<1x128xf32> to vector<64x128xf32>
    %29 = arith.addf %25, %28 : vector<64x128xf32>
    %c0_26 = arith.constant 0 : index
    %c0_27 = arith.constant 0 : index
    %30 = vector.load %arg4[%c0_26, %c0_27] : memref<64x128xf32, #tpu.memory_space<vmem>>, vector<64x128xf32>
    tpu.vector_store %arg4[%c0_26, %c0_27], %29 {strides = array<i32>} : memref<64x128xf32, #tpu.memory_space<vmem>>, vector<64x128xf32>,
    return
  }
}

</mosaic_0001>

<llo_original>
// kernel: graphsage_forward_padded.1
$region0: #{graphsage_forward_padded.1}
  #allocation0 [shape = 'u32[]', space=smem, size = 0x4, offset = 0x4, fixed_abs, tag = 'smem constant byte address 0x4 - core index']
  #allocation1 [shape = 'u32[144,128]{1,0:T(1,128)}', space=vmem, size = 0x12000, scoped, tag = 'internal scratch']
  %s0 = inlined_call_operand.vmem [shape: f32[64,64], index: 0, kind: input, shape index: {}]
  %s1 = inlined_call_operand.vmem [shape: f32[64,128], index: 1, kind: input, shape index: {}]
  %s2 = inlined_call_operand.hbm [shape: f32[3,128,128], index: 2, kind: input, shape index: {}]
  %s3 = inlined_call_operand.vmem [shape: f32[3,1,128], index: 3, kind: input, shape index: {}]
  %s4 = inlined_call_operand.hbm [shape: f32[64,128], index: 4, kind: output, shape index: {}]
  %s5 = sld [smem:[#allocation0]]
  $region30: #{graphsage_forward_padded.1} parent=0
    _
  %s7 = ssub.s32 1, %s5
  %s8 = scalar_select 0, %s7, %s5
  $region1: #{graphsage_forward_padded.1} parent=0
    #allocation2 [shape = 'u8[196608]{0}', space=vmem, size = 0x30000, scoped, tag = 'input window, operand 2, single buffered']
    #allocation3 [shape = 's32[1]{0}', space=sflag, size = 0x4, scoped, tag = 'scoped memory for graphsage_forward_padded.1']
    #allocation4 [shape = 's32[1]{0}', space=sflag, size = 0x4, scoped, tag = 'scoped memory for graphsage_forward_padded.1']
    #allocation5 [shape = 'u8[32768]{0}', space=vmem, size = 0x8000, scoped, tag = 'output window, operand 0, single buffered']
    %9 = vsyncpa [#allocation3], 0
    %10 = vsyncpa [#allocation4], 0
    // Predicated region
    $region2: #{graphsage_forward_padded.1} parent=1 // pred_check
      _
    $region3: #{graphsage_forward_padded.1} parent=1 // pred_check_branch
      %12 = sbr.rel (0) target = $region5
    $region4: #{graphsage_forward_padded.1} parent=1 // pred_region
      _
    $region5: #{graphsage_forward_padded.1} parent=1 // pred_fallthru
      _
    // Predicated region
    $region6: #{graphsage_forward_padded.1} parent=1 // pred_check
      _
    $region7: #{graphsage_forward_padded.1} parent=1 // pred_check_branch
      %14 = sbr.rel (0) target = $region9
    $region8: #{graphsage_forward_padded.1} parent=1 // pred_region
      _
    $region9: #{graphsage_forward_padded.1} parent=1 // pred_fallthru
      _
    // Predicated region
    $region10: #{graphsage_forward_padded.1} parent=1 // pred_check
      _
    $region11: #{graphsage_forward_padded.1} parent=1 // pred_check_branch
      %16 = sbr.rel (0) target = $region13
    $region12: #{graphsage_forward_padded.1} parent=1 // pred_region
      %s18 = ssub.s32 6144, 6144
      %19 = vsyncadd [#allocation3], %s18
      %s20 = sshll.u32 [#allocation2], 4
      %s21 = int_to_ptr.vmem [resolvable:$true] %s20
      %26 = dma.hbm_to_vmem [thread:$0]  %s2, 6144, %s21, [#allocation3], 128, 128, 8
    $region13: #{graphsage_forward_padded.1} parent=1 // pred_fallthru
      _
    // Predicated region
    $region14: #{graphsage_forward_padded.1} parent=1 // pred_check
      _
    $region15: #{graphsage_forward_padded.1} parent=1 // pred_check_branch
      %28 = sbr.rel (0) target = $region17
    $region16: #{graphsage_forward_padded.1} parent=1 // pred_region
      _
    $region17: #{graphsage_forward_padded.1} parent=1 // pred_fallthru
      _
    // Predicated region
    $region18: #{graphsage_forward_padded.1} parent=1 // pred_check
      _
    $region19: #{graphsage_forward_padded.1} parent=1 // pred_check_branch
      %30 = sbr.rel (0) target = $region21
    $region20: #{graphsage_forward_padded.1} parent=1 // pred_region
      %31 = dma.done [#allocation3], 6144
    $region21: #{graphsage_forward_padded.1} parent=1 // pred_fallthru
      _
    %v32 = vld [vmem:[%s0] sm:$0xff]
    %v33 = vld [vmem:[%s0 + $0x8] sm:$0xff]
    %v34 = vld [vmem:[%s0 + $0x10] sm:$0xff]
    %v35 = vld [vmem:[%s0 + $0x18] sm:$0xff]
    %v36 = vld [vmem:[%s0 + $0x20] sm:$0xff]
    %v37 = vld [vmem:[%s0 + $0x28] sm:$0xff]
    %v38 = vld [vmem:[%s0 + $0x30] sm:$0xff]
    %v39 = vld [vmem:[%s0 + $0x38] sm:$0xff]
    %v40 = vld [vmem:[%s1] sm:$0xff]
    %v41 = vld [vmem:[%s1 + $0x8] sm:$0xff]
    %v42 = vld [vmem:[%s1 + $0x10] sm:$0xff]
    %v43 = vld [vmem:[%s1 + $0x18] sm:$0xff]
    %v44 = vld [vmem:[%s1 + $0x20] sm:$0xff]
    %v45 = vld [vmem:[%s1 + $0x28] sm:$0xff]
    %v46 = vld [vmem:[%s1 + $0x30] sm:$0xff]
    %v47 = vld [vmem:[%s1 + $0x38] sm:$0xff]
    %vm48 = vcmask 523264
    %v50 = vsel %vm48, %v32, 0
    %v53 = vsel %vm48, %v33, 0
    %v56 = vsel %vm48, %v34, 0
    %v59 = vsel %vm48, %v35, 0
    %v62 = vsel %vm48, %v36, 0
    %v65 = vsel %vm48, %v37, 0
    %v68 = vsel %vm48, %v38, 0
    %v71 = vsel %vm48, %v39, 0
    %73 = vmatprep.subr.mxu0 0.0
    %74 = vmatpush1.msra.mxu0 %v40
    %75 = vmatprep.subr.mxu0 0.0
    %76 = vmatpush1.msra.mxu0 %v41
    %77 = vmatprep.subr.mxu0 0.0
    %78 = vmatpush1.msra.mxu0 %v42
    %79 = vmatprep.subr.mxu0 0.0
    %80 = vmatpush1.msra.mxu0 %v43
    %81 = vmatprep.subr.mxu0 0.0
    %82 = vmatpush1.msra.mxu0 %v44
    %83 = vmatprep.subr.mxu0 0.0
    %84 = vmatpush1.msra.mxu0 %v45
    %85 = vmatprep.subr.mxu0 0.0
    %86 = vmatpush1.msra.mxu0 %v46
    %87 = vmatprep.subr.mxu0 0.0
    %88 = vmatpush1.msra.mxu0 %v47
    %89 = vmatprep.subr.mxu0 0.0
    %90 = vmatpush1.msra.mxu0 0.0
    %91 = vmatprep.subr.mxu0 0.0
    %92 = vmatpush1.msra.mxu0 0.0
    %93 = vmatprep.subr.mxu0 0.0
    %94 = vmatpush1.msra.mxu0 0.0
    %95 = vmatprep.subr.mxu0 0.0
    %96 = vmatpush1.msra.mxu0 0.0
    %97 = vmatprep.subr.mxu0 0.0
    %98 = vmatpush1.msra.mxu0 0.0
    %99 = vmatprep.subr.mxu0 0.0
    %100 = vmatpush1.msra.mxu0 0.0
    %101 = vmatprep.subr.mxu0 0.0
    %102 = vmatpush1.msra.mxu0 0.0
    %103 = vmatprep.subr.mxu0 0.0
    %104 = vmatpush1.msra.mxu0 0.0
    %105 = vmatprep.subr.mxu0 0.0
    %106 = vmatpush1.msra.mxu0 0.0
    %107 = vmatprep.subr.mxu0 0.0
    %108 = vmatpush1.msra.mxu0 0.0
    %109 = vmatprep.subr.mxu0 0.0
    %110 = vmatpush1.msra.mxu0 0.0
    %111 = vmatprep.subr.mxu0 0.0
    %112 = vmatpush1.msra.mxu0 0.0
    %113 = vmatprep.subr.mxu0 0.0
    %114 = vmatpush1.msra.mxu0 0.0
    %115 = vmatprep.subr.mxu0 0.0
    %116 = vmatpush1.msra.mxu0 0.0
    %117 = vmatprep.subr.mxu0 0.0
    %118 = vmatpush1.msra.mxu0 0.0
    %119 = vmatprep.subr.mxu0 0.0
    %120 = vmatpush1.msra.mxu0 0.0
    %121 = vmatprep.subr.mxu0 0.0
    %122 = vmatpush1.msra.mxu0 0.0
    %123 = vmatprep.subr.mxu0 0.0
    %124 = vmatpush1.msra.mxu0 0.0
    %125 = vmatprep.subr.mxu0 0.0
    %126 = vmatpush1.msra.mxu0 0.0
    %127 = vmatprep.subr.mxu0 0.0
    %128 = vmatpush1.msra.mxu0 0.0
    %129 = vmatprep.subr.mxu0 0.0
    %130 = vmatpush1.msra.mxu0 0.0
    %131 = vmatprep.subr.mxu0 0.0
    %132 = vmatpush1.msra.mxu0 0.0
    %133 = vmatprep.subr.mxu0 0.0
    %134 = vmatpush1.msra.mxu0 0.0
    %135 = vmatprep.subr.mxu0 0.0
    %136 = vmatpush1.msra.mxu0 0.0
    %137 = vmatprep.mubr.f32.mxu0 0.0
    %138 = vmatmul.mubr.f32.gmra.mrb[0].mxu0 %v50
    %v139 = vpop.f32.mrb[0].mxu0
    %v140 = vadd.f32 0.0, %v139
    %v141 = vpop.f32.mrb[0].mxu0
    %142 = vmatprep.mubr.f32.mxu0 0.0
    %143 = vmatmul.mubr.f32.gmra.mrb[0].mxu0 %v53
    %v144 = vpop.f32.mrb[0].mxu0
    %v145 = vadd.f32 0.0, %v144
    %v146 = vpop.f32.mrb[0].mxu0
    %147 = vmatprep.mubr.f32.mxu0 0.0
    %148 = vmatmul.mubr.f32.gmra.mrb[0].mxu0 %v56
    %v149 = vpop.f32.mrb[0].mxu0
    %v150 = vadd.f32 0.0, %v149
    %v151 = vpop.f32.mrb[0].mxu0
    %152 = vmatprep.mubr.f32.mxu0 0.0
    %153 = vmatmul.mubr.f32.gmra.mrb[0].mxu0 %v59
    %v154 = vpop.f32.mrb[0].mxu0
    %v155 = vadd.f32 0.0, %v154
    %v156 = vpop.f32.mrb[0].mxu0
    %157 = vmatprep.mubr.f32.mxu0 0.0
    %158 = vmatmul.mubr.f32.gmra.mrb[0].mxu0 %v62
    %v159 = vpop.f32.mrb[0].mxu0
    %v160 = vadd.f32 0.0, %v159
    %v161 = vpop.f32.mrb[0].mxu0
    %162 = vmatprep.mubr.f32.mxu0 0.0
    %163 = vmatmul.mubr.f32.gmra.mrb[0].mxu0 %v65
    %v164 = vpop.f32.mrb[0].mxu0
    %v165 = vadd.f32 0.0, %v164
    %v166 = vpop.f32.mrb[0].mxu0
    %167 = vmatprep.mubr.f32.mxu0 0.0
    %168 = vmatmul.mubr.f32.gmra.mrb[0].mxu0 %v68
    %v169 = vpop.f32.mrb[0].mxu0
    %v170 = vadd.f32 0.0, %v169
    %v171 = vpop.f32.mrb[0].mxu0
    %172 = vmatprep.mubr.f32.mxu0 0.0
    %173 = vmatmul.mubr.f32.gmra.mrb[0].mxu0 %v71
    %v174 = vpop.f32.mrb[0].mxu0
    %v175 = vadd.f32 0.0, %v174
    %v176 = vpop.f32.mrb[0].mxu0
    %177 = vdwg.mxu0
    %v178 = vld [vmem:[#allocation2] sm:$0xff]
    %v179 = vld [vmem:[#allocation2 + $0x8] sm:$0xff]
    %v180 = vld [vmem:[#allocation2 + $0x10] sm:$0xff]
    %v181 = vld [vmem:[#allocation2 + $0x18] sm:$0xff]
    %v182 = vld [vmem:[#allocation2 + $0x20] sm:$0xff]
    %v183 = vld [vmem:[#allocation2 + $0x28] sm:$0xff]
    %v184 = vld [vmem:[#allocation2 + $0x30] sm:$0xff]
    %v185 = vld [vmem:[#allocation2 + $0x38] sm:$0xff]
    %v186 = vld [vmem:[#allocation2 + $0x40] sm:$0xff]
    %v187 = vld [vmem:[#allocation2 + $0x48] sm:$0xff]
    %v188 = vld [vmem:[#allocation2 + $0x50] sm:$0xff]
    %v189 = vld [vmem:[#allocation2 + $0x58] sm:$0xff]
    %v190 = vld [vmem:[#allocation2 + $0x60] sm:$0xff]
    %v191 = vld [vmem:[#allocation2 + $0x68] sm:$0xff]
    %v192 = vld [vmem:[#allocation2 + $0x70] sm:$0xff]
    %v193 = vld [vmem:[#allocation2 + $0x78] sm:$0xff]
    %v194 = vld [vmem:[%s3] sm:$0x1]
    %v196 = vlaneseq
    %v197 = vshrl.u32 %v196, 7
    %v198 = vsub.s32 0, %v197
    %v199 = vrot.slane %v194, %v198
    %201 = vmatprep.subr.mxu0 0.0
    %202 = vmatpush1.msra.mxu0 %v178
    %203 = vmatprep.subr.mxu0 0.0
    %204 = vmatpush1.msra.mxu0 %v179
    %205 = vmatprep.subr.mxu0 0.0
    %206 = vmatpush1.msra.mxu0 %v180
    %207 = vmatprep.subr.mxu0 0.0
    %208 = vmatpush1.msra.mxu0 %v181
    %209 = vmatprep.subr.mxu0 0.0
    %210 = vmatpush1.msra.mxu0 %v182
    %211 = vmatprep.subr.mxu0 0.0
    %212 = vmatpush1.msra.mxu0 %v183
    %213 = vmatprep.subr.mxu0 0.0
    %214 = vmatpush1.msra.mxu0 %v184
    %215 = vmatprep.subr.mxu0 0.0
    %216 = vmatpush1.msra.mxu0 %v185
    %217 = vmatprep.subr.mxu0 0.0
    %218 = vmatpush1.msra.mxu0 %v186
    %219 = vmatprep.subr.mxu0 0.0
    %220 = vmatpush1.msra.mxu0 %v187
    %221 = vmatprep.subr.mxu0 0.0
    %222 = vmatpush1.msra.mxu0 %v188
    %223 = vmatprep.subr.mxu0 0.0
    %224 = vmatpush1.msra.mxu0 %v189
    %225 = vmatprep.subr.mxu0 0.0
    %226 = vmatpush1.msra.mxu0 %v190
    %227 = vmatprep.subr.mxu0 0.0
    %228 = vmatpush1.msra.mxu0 %v191
    %229 = vmatprep.subr.mxu0 0.0
    %230 = vmatpush1.msra.mxu0 %v192
    %231 = vmatprep.subr.mxu0 0.0
    %232 = vmatpush1.msra.mxu0 %v193
    %233 = vmatprep.subr.mxu0 0.0
    %234 = vmatpush1.msra.mxu0 0.0
    %235 = vmatprep.subr.mxu0 0.0
    %236 = vmatpush1.msra.mxu0 0.0
    %237 = vmatprep.subr.mxu0 0.0
    %238 = vmatpush1.msra.mxu0 0.0
    %239 = vmatprep.subr.mxu0 0.0
    %240 = vmatpush1.msra.mxu0 0.0
    %241 = vmatprep.subr.mxu0 0.0
    %242 = vmatpush1.msra.mxu0 0.0
    %243 = vmatprep.subr.mxu0 0.0
    %244 = vmatpush1.msra.mxu0 0.0
    %245 = vmatprep.subr.mxu0 0.0
    %246 = vmatpush1.msra.mxu0 0.0
    %247 = vmatprep.subr.mxu0 0.0
    %248 = vmatpush1.msra.mxu0 0.0
    %249 = vmatprep.subr.mxu0 0.0
    %250 = vmatpush1.msra.mxu0 0.0
    %251 = vmatprep.subr.mxu0 0.0
    %252 = vmatpush1.msra.mxu0 0.0
    %253 = vmatprep.subr.mxu0 0.0
    %254 = vmatpush1.msra.mxu0 0.0
    %255 = vmatprep.subr.mxu0 0.0
    %256 = vmatpush1.msra.mxu0 0.0
    %257 = vmatprep.subr.mxu0 0.0
    %258 = vmatpush1.msra.mxu0 0.0
    %259 = vmatprep.subr.mxu0 0.0
    %260 = vmatpush1.msra.mxu0 0.0
    %261 = vmatprep.subr.mxu0 0.0
    %262 = vmatpush1.msra.mxu0 0.0
    %263 = vmatprep.subr.mxu0 0.0
    %264 = vmatpush1.msra.mxu0 0.0
    %265 = vmatprep.mubr.f32.mxu0 0.0
    %266 = vmatmul.mubr.f32.gmra.mrb[0].mxu0 %v140
    %v267 = vpop.f32.mrb[0].mxu0
    %v268 = vadd.f32 %v199, %v267
    %v269 = vpop.f32.mrb[0].mxu0
    %270 = vmatprep.mubr.f32.mxu0 0.0
    %271 = vmatmul.mubr.f32.gmra.mrb[0].mxu0 %v145
    %v272 = vpop.f32.mrb[0].mxu0
    %v273 = vadd.f32 %v199, %v272
    %v274 = vpop.f32.mrb[0].mxu0
    %275 = vmatprep.mubr.f32.mxu0 0.0
    %276 = vmatmul.mubr.f32.gmra.mrb[0].mxu0 %v150
    %v277 = vpop.f32.mrb[0].mxu0
    %v278 = vadd.f32 %v199, %v277
    %v279 = vpop.f32.mrb[0].mxu0
    %280 = vmatprep.mubr.f32.mxu0 0.0
    %281 = vmatmul.mubr.f32.gmra.mrb[0].mxu0 %v155
    %v282 = vpop.f32.mrb[0].mxu0
    %v283 = vadd.f32 %v199, %v282
    %v284 = vpop.f32.mrb[0].mxu0
    %285 = vmatprep.mubr.f32.mxu0 0.0
    %286 = vmatmul.mubr.f32.gmra.mrb[0].mxu0 %v160
    %v287 = vpop.f32.mrb[0].mxu0
    %v288 = vadd.f32 %v199, %v287
    %v289 = vpop.f32.mrb[0].mxu0
    %290 = vmatprep.mubr.f32.mxu0 0.0
    %291 = vmatmul.mubr.f32.gmra.mrb[0].mxu0 %v165
    %v292 = vpop.f32.mrb[0].mxu0
    %v293 = vadd.f32 %v199, %v292
    %v294 = vpop.f32.mrb[0].mxu0
    %295 = vmatprep.mubr.f32.mxu0 0.0
    %296 = vmatmul.mubr.f32.gmra.mrb[0].mxu0 %v170
    %v297 = vpop.f32.mrb[0].mxu0
    %v298 = vadd.f32 %v199, %v297
    %v299 = vpop.f32.mrb[0].mxu0
    %300 = vmatprep.mubr.f32.mxu0 0.0
    %301 = vmatmul.mubr.f32.gmra.mrb[0].mxu0 %v175
    %v302 = vpop.f32.mrb[0].mxu0
    %v303 = vadd.f32 %v199, %v302
    %v304 = vpop.f32.mrb[0].mxu0
    %305 = vdwg.mxu0
    %v306 = vmax.f32 %v268, 0.0
    %v307 = vmax.f32 %v273, 0.0
    %v308 = vmax.f32 %v278, 0.0
    %v309 = vmax.f32 %v283, 0.0
    %v310 = vmax.f32 %v288, 0.0
    %v311 = vmax.f32 %v293, 0.0
    %v312 = vmax.f32 %v298, 0.0
    %v313 = vmax.f32 %v303, 0.0
    %314 = vmatprep.subr.mxu0 0.0
    %315 = vmatpush1.msra.mxu0 %v306
    %316 = vmatprep.subr.mxu0 0.0
    %317 = vmatpush1.msra.mxu0 %v307
    %318 = vmatprep.subr.mxu0 0.0
    %319 = vmatpush1.msra.mxu0 %v308
    %320 = vmatprep.subr.mxu0 0.0
    %321 = vmatpush1.msra.mxu0 %v309
    %322 = vmatprep.subr.mxu0 0.0
    %323 = vmatpush1.msra.mxu0 %v310
    %324 = vmatprep.subr.mxu0 0.0
    %325 = vmatpush1.msra.mxu0 %v311
    %326 = vmatprep.subr.mxu0 0.0
    %327 = vmatpush1.msra.mxu0 %v312
    %328 = vmatprep.subr.mxu0 0.0
    %329 = vmatpush1.msra.mxu0 %v313
    %330 = vmatprep.subr.mxu0 0.0
    %331 = vmatpush1.msra.mxu0 0.0
    %332 = vmatprep.subr.mxu0 0.0
    %333 = vmatpush1.msra.mxu0 0.0
    %334 = vmatprep.subr.mxu0 0.0
    %335 = vmatpush1.msra.mxu0 0.0
    %336 = vmatprep.subr.mxu0 0.0
    %337 = vmatpush1.msra.mxu0 0.0
    %338 = vmatprep.subr.mxu0 0.0
    %339 = vmatpush1.msra.mxu0 0.0
    %340 = vmatprep.subr.mxu0 0.0
    %341 = vmatpush1.msra.mxu0 0.0
    %342 = vmatprep.subr.mxu0 0.0
    %343 = vmatpush1.msra.mxu0 0.0
    %344 = vmatprep.subr.mxu0 0.0
    %345 = vmatpush1.msra.mxu0 0.0
    %346 = vmatprep.subr.mxu0 0.0
    %347 = vmatpush1.msra.mxu0 0.0
    %348 = vmatprep.subr.mxu0 0.0
    %349 = vmatpush1.msra.mxu0 0.0
    %350 = vmatprep.subr.mxu0 0.0
    %351 = vmatpush1.msra.mxu0 0.0
    %352 = vmatprep.subr.mxu0 0.0
    %353 = vmatpush1.msra.mxu0 0.0
    %354 = vmatprep.subr.mxu0 0.0
    %355 = vmatpush1.msra.mxu0 0.0
    %356 = vmatprep.subr.mxu0 0.0
    %357 = vmatpush1.msra.mxu0 0.0
    %358 = vmatprep.subr.mxu0 0.0
    %359 = vmatpush1.msra.mxu0 0.0
    %360 = vmatprep.subr.mxu0 0.0
    %361 = vmatpush1.msra.mxu0 0.0
    %362 = vmatprep.subr.mxu0 0.0
    %363 = vmatpush1.msra.mxu0 0.0
    %364 = vmatprep.subr.mxu0 0.0
    %365 = vmatpush1.msra.mxu0 0.0
    %366 = vmatprep.subr.mxu0 0.0
    %367 = vmatpush1.msra.mxu0 0.0
    %368 = vmatprep.subr.mxu0 0.0
    %369 = vmatpush1.msra.mxu0 0.0
    %370 = vmatprep.subr.mxu0 0.0
    %371 = vmatpush1.msra.mxu0 0.0
    %372 = vmatprep.subr.mxu0 0.0
    %373 = vmatpush1.msra.mxu0 0.0
    %374 = vmatprep.subr.mxu0 0.0
    %375 = vmatpush1.msra.mxu0 0.0
    %376 = vmatprep.subr.mxu0 0.0
    %377 = vmatpush1.msra.mxu0 0.0
    %378 = vmatprep.mubr.f32.mxu0 0.0
    %379 = vmatmul.mubr.f32.gmra.mrb[0].mxu0 %v50
    %v380 = vpop.f32.mrb[0].mxu0
    %v381 = vadd.f32 0.0, %v380
    %v382 = vpop.f32.mrb[0].mxu0
    %383 = vmatprep.mubr.f32.mxu0 0.0
    %384 = vmatmul.mubr.f32.gmra.mrb[0].mxu0 %v53
    %v385 = vpop.f32.mrb[0].mxu0
    %v386 = vadd.f32 0.0, %v385
    %v387 = vpop.f32.mrb[0].mxu0
    %388 = vmatprep.mubr.f32.mxu0 0.0
    %389 = vmatmul.mubr.f32.gmra.mrb[0].mxu0 %v56
    %v390 = vpop.f32.mrb[0].mxu0
    %v391 = vadd.f32 0.0, %v390
    %v392 = vpop.f32.mrb[0].mxu0
    %393 = vmatprep.mubr.f32.mxu0 0.0
    %394 = vmatmul.mubr.f32.gmra.mrb[0].mxu0 %v59
    %v395 = vpop.f32.mrb[0].mxu0
    %v396 = vadd.f32 0.0, %v395
    %v397 = vpop.f32.mrb[0].mxu0
    %398 = vmatprep.mubr.f32.mxu0 0.0
    %399 = vmatmul.mubr.f32.gmra.mrb[0].mxu0 %v62
    %v400 = vpop.f32.mrb[0].mxu0
    %v401 = vadd.f32 0.0, %v400
    %v402 = vpop.f32.mrb[0].mxu0
    %403 = vmatprep.mubr.f32.mxu0 0.0
    %404 = vmatmul.mubr.f32.gmra.mrb[0].mxu0 %v65
    %v405 = vpop.f32.mrb[0].mxu0
    %v406 = vadd.f32 0.0, %v405
    %v407 = vpop.f32.mrb[0].mxu0
    %408 = vmatprep.mubr.f32.mxu0 0.0
    %409 = vmatmul.mubr.f32.gmra.mrb[0].mxu0 %v68
    %v410 = vpop.f32.mrb[0].mxu0
    %v411 = vadd.f32 0.0, %v410
    %v412 = vpop.f32.mrb[0].mxu0
    %413 = vmatprep.mubr.f32.mxu0 0.0
    %414 = vmatmul.mubr.f32.gmra.mrb[0].mxu0 %v71
    %v415 = vpop.f32.mrb[0].mxu0
    %v416 = vadd.f32 0.0, %v415
    %v417 = vpop.f32.mrb[0].mxu0
    %418 = vdwg.mxu0
    %s419 = scalar_lea.vmem [#allocation2], 128
    %v420 = vld [vmem:[%s419] sm:$0xff]
    %v421 = vld [vmem:[%s419 + $0x8] sm:$0xff]
    %v422 = vld [vmem:[%s419 + $0x10] sm:$0xff]
    %v423 = vld [vmem:[%s419 + $0x18] sm:$0xff]
    %v424 = vld [vmem:[%s419 + $0x20] sm:$0xff]
    %v425 = vld [vmem:[%s419 + $0x28] sm:$0xff]
    %v426 = vld [vmem:[%s419 + $0x30] sm:$0xff]
    %v427 = vld [vmem:[%s419 + $0x38] sm:$0xff]
    %v428 = vld [vmem:[%s419 + $0x40] sm:$0xff]
    %v429 = vld [vmem:[%s419 + $0x48] sm:$0xff]
    %v430 = vld [vmem:[%s419 + $0x50] sm:$0xff]
    %v431 = vld [vmem:[%s419 + $0x58] sm:$0xff]
    %v432 = vld [vmem:[%s419 + $0x60] sm:$0xff]
    %v433 = vld [vmem:[%s419 + $0x68] sm:$0xff]
    %v434 = vld [vmem:[%s419 + $0x70] sm:$0xff]
    %v435 = vld [vmem:[%s419 + $0x78] sm:$0xff]
    %s436 = scalar_lea.vmem %s3, 1
    %v437 = vld [vmem:[%s436] sm:$0x1]
    %v439 = vlaneseq
    %v440 = vshrl.u32 %v439, 7
    %v441 = vsub.s32 0, %v440
    %v442 = vrot.slane %v437, %v441
    %444 = vmatprep.subr.mxu0 0.0
    %445 = vmatpush1.msra.mxu0 %v420
    %446 = vmatprep.subr.mxu0 0.0
    %447 = vmatpush1.msra.mxu0 %v421
    %448 = vmatprep.subr.mxu0 0.0
    %449 = vmatpush1.msra.mxu0 %v422
    %450 = vmatprep.subr.mxu0 0.0
    %451 = vmatpush1.msra.mxu0 %v423
    %452 = vmatprep.subr.mxu0 0.0
    %453 = vmatpush1.msra.mxu0 %v424
    %454 = vmatprep.subr.mxu0 0.0
    %455 = vmatpush1.msra.mxu0 %v425
    %456 = vmatprep.subr.mxu0 0.0
    %457 = vmatpush1.msra.mxu0 %v426
    %458 = vmatprep.subr.mxu0 0.0
    %459 = vmatpush1.msra.mxu0 %v427
    %460 = vmatprep.subr.mxu0 0.0
    %461 = vmatpush1.msra.mxu0 %v428
    %462 = vmatprep.subr.mxu0 0.0
    %463 = vmatpush1.msra.mxu0 %v429
    %464 = vmatprep.subr.mxu0 0.0
    %465 = vmatpush1.msra.mxu0 %v430
    %466 = vmatprep.subr.mxu0 0.0
    %467 = vmatpush1.msra.mxu0 %v431
    %468 = vmatprep.subr.mxu0 0.0
    %469 = vmatpush1.msra.mxu0 %v432
    %470 = vmatprep.subr.mxu0 0.0
    %471 = vmatpush1.msra.mxu0 %v433
    %472 = vmatprep.subr.mxu0 0.0
    %473 = vmatpush1.msra.mxu0 %v434
    %474 = vmatprep.subr.mxu0 0.0
    %475 = vmatpush1.msra.mxu0 %v435
    %476 = vmatprep.subr.mxu0 0.0
    %477 = vmatpush1.msra.mxu0 0.0
    %478 = vmatprep.subr.mxu0 0.0
    %479 = vmatpush1.msra.mxu0 0.0
    %480 = vmatprep.subr.mxu0 0.0
    %481 = vmatpush1.msra.mxu0 0.0
    %482 = vmatprep.subr.mxu0 0.0
    %483 = vmatpush1.msra.mxu0 0.0
    %484 = vmatprep.subr.mxu0 0.0
    %485 = vmatpush1.msra.mxu0 0.0
    %486 = vmatprep.subr.mxu0 0.0
    %487 = vmatpush1.msra.mxu0 0.0
    %488 = vmatprep.subr.mxu0 0.0
    %489 = vmatpush1.msra.mxu0 0.0
    %490 = vmatprep.subr.mxu0 0.0
    %491 = vmatpush1.msra.mxu0 0.0
    %492 = vmatprep.subr.mxu0 0.0
    %493 = vmatpush1.msra.mxu0 0.0
    %494 = vmatprep.subr.mxu0 0.0
    %495 = vmatpush1.msra.mxu0 0.0
    %496 = vmatprep.subr.mxu0 0.0
    %497 = vmatpush1.msra.mxu0 0.0
    %498 = vmatprep.subr.mxu0 0.0
    %499 = vmatpush1.msra.mxu0 0.0
    %500 = vmatprep.subr.mxu0 0.0
    %501 = vmatpush1.msra.mxu0 0.0
    %502 = vmatprep.subr.mxu0 0.0
    %503 = vmatpush1.msra.mxu0 0.0
    %504 = vmatprep.subr.mxu0 0.0
    %505 = vmatpush1.msra.mxu0 0.0
    %506 = vmatprep.subr.mxu0 0.0
    %507 = vmatpush1.msra.mxu0 0.0
    %508 = vmatprep.mubr.f32.mxu0 0.0
    %509 = vmatmul.mubr.f32.gmra.mrb[0].mxu0 %v381
    %v510 = vpop.f32.mrb[0].mxu0
    %v511 = vadd.f32 %v442, %v510
    %v512 = vpop.f32.mrb[0].mxu0
    %513 = vmatprep.mubr.f32.mxu0 0.0
    %514 = vmatmul.mubr.f32.gmra.mrb[0].mxu0 %v386
    %v515 = vpop.f32.mrb[0].mxu0
    %v516 = vadd.f32 %v442, %v515
    %v517 = vpop.f32.mrb[0].mxu0
    %518 = vmatprep.mubr.f32.mxu0 0.0
    %519 = vmatmul.mubr.f32.gmra.mrb[0].mxu0 %v391
    %v520 = vpop.f32.mrb[0].mxu0
    %v521 = vadd.f32 %v442, %v520
    %v522 = vpop.f32.mrb[0].mxu0
    %523 = vmatprep.mubr.f32.mxu0 0.0
    %524 = vmatmul.mubr.f32.gmra.mrb[0].mxu0 %v396
    %v525 = vpop.f32.mrb[0].mxu0
    %v526 = vadd.f32 %v442, %v525
    %v527 = vpop.f32.mrb[0].mxu0
    %528 = vmatprep.mubr.f32.mxu0 0.0
    %529 = vmatmul.mubr.f32.gmra.mrb[0].mxu0 %v401
    %v530 = vpop.f32.mrb[0].mxu0
    %v531 = vadd.f32 %v442, %v530
    %v532 = vpop.f32.mrb[0].mxu0
    %533 = vmatprep.mubr.f32.mxu0 0.0
    %534 = vmatmul.mubr.f32.gmra.mrb[0].mxu0 %v406
    %v535 = vpop.f32.mrb[0].mxu0
    %v536 = vadd.f32 %v442, %v535
    %v537 = vpop.f32.mrb[0].mxu0
    %538 = vmatprep.mubr.f32.mxu0 0.0
    %539 = vmatmul.mubr.f32.gmra.mrb[0].mxu0 %v411
    %v540 = vpop.f32.mrb[0].mxu0
    %v541 = vadd.f32 %v442, %v540
    %v542 = vpop.f32.mrb[0].mxu0
    %543 = vmatprep.mubr.f32.mxu0 0.0
    %544 = vmatmul.mubr.f32.gmra.mrb[0].mxu0 %v416
    %v545 = vpop.f32.mrb[0].mxu0
    %v546 = vadd.f32 %v442, %v545
    %v547 = vpop.f32.mrb[0].mxu0
    %548 = vdwg.mxu0
    %v549 = vmax.f32 %v511, 0.0
    %v550 = vmax.f32 %v516, 0.0
    %v551 = vmax.f32 %v521, 0.0
    %v552 = vmax.f32 %v526, 0.0
    %v553 = vmax.f32 %v531, 0.0
    %v554 = vmax.f32 %v536, 0.0
    %v555 = vmax.f32 %v541, 0.0
    %v556 = vmax.f32 %v546, 0.0
    %557 = vmatprep.subr.mxu0 0.0
    %558 = vmatpush1.msra.mxu0 %v549
    %559 = vmatprep.subr.mxu0 0.0
    %560 = vmatpush1.msra.mxu0 %v550
    %561 = vmatprep.subr.mxu0 0.0
    %562 = vmatpush1.msra.mxu0 %v551
    %563 = vmatprep.subr.mxu0 0.0
    %564 = vmatpush1.msra.mxu0 %v552
    %565 = vmatprep.subr.mxu0 0.0
    %566 = vmatpush1.msra.mxu0 %v553
    %567 = vmatprep.subr.mxu0 0.0
    %568 = vmatpush1.msra.mxu0 %v554
    %569 = vmatprep.subr.mxu0 0.0
    %570 = vmatpush1.msra.mxu0 %v555
    %571 = vmatprep.subr.mxu0 0.0
    %572 = vmatpush1.msra.mxu0 %v556
    %573 = vmatprep.subr.mxu0 0.0
    %574 = vmatpush1.msra.mxu0 0.0
    %575 = vmatprep.subr.mxu0 0.0
    %576 = vmatpush1.msra.mxu0 0.0
    %577 = vmatprep.subr.mxu0 0.0
    %578 = vmatpush1.msra.mxu0 0.0
    %579 = vmatprep.subr.mxu0 0.0
    %580 = vmatpush1.msra.mxu0 0.0
    %581 = vmatprep.subr.mxu0 0.0
    %582 = vmatpush1.msra.mxu0 0.0
    %583 = vmatprep.subr.mxu0 0.0
    %584 = vmatpush1.msra.mxu0 0.0
    %585 = vmatprep.subr.mxu0 0.0
    %586 = vmatpush1.msra.mxu0 0.0
    %587 = vmatprep.subr.mxu0 0.0
    %588 = vmatpush1.msra.mxu0 0.0
    %589 = vmatprep.subr.mxu0 0.0
    %590 = vmatpush1.msra.mxu0 0.0
    %591 = vmatprep.subr.mxu0 0.0
    %592 = vmatpush1.msra.mxu0 0.0
    %593 = vmatprep.subr.mxu0 0.0
    %594 = vmatpush1.msra.mxu0 0.0
    %595 = vmatprep.subr.mxu0 0.0
    %596 = vmatpush1.msra.mxu0 0.0
    %597 = vmatprep.subr.mxu0 0.0
    %598 = vmatpush1.msra.mxu0 0.0
    %599 = vmatprep.subr.mxu0 0.0
    %600 = vmatpush1.msra.mxu0 0.0
    %601 = vmatprep.subr.mxu0 0.0
    %602 = vmatpush1.msra.mxu0 0.0
    %603 = vmatprep.subr.mxu0 0.0
    %604 = vmatpush1.msra.mxu0 0.0
    %605 = vmatprep.subr.mxu0 0.0
    %606 = vmatpush1.msra.mxu0 0.0
    %607 = vmatprep.subr.mxu0 0.0
    %608 = vmatpush1.msra.mxu0 0.0
    %609 = vmatprep.subr.mxu0 0.0
    %610 = vmatpush1.msra.mxu0 0.0
    %611 = vmatprep.subr.mxu0 0.0
    %612 = vmatpush1.msra.mxu0 0.0
    %613 = vmatprep.subr.mxu0 0.0
    %614 = vmatpush1.msra.mxu0 0.0
    %615 = vmatprep.subr.mxu0 0.0
    %616 = vmatpush1.msra.mxu0 0.0
    %617 = vmatprep.subr.mxu0 0.0
    %618 = vmatpush1.msra.mxu0 0.0
    %619 = vmatprep.subr.mxu0 0.0
    %620 = vmatpush1.msra.mxu0 0.0
    %621 = vmatprep.mubr.f32.mxu0 0.0
    %622 = vmatmul.mubr.f32.gmra.mrb[0].mxu0 %v50
    %v623 = vpop.f32.mrb[0].mxu0
    %v624 = vadd.f32 0.0, %v623
    %v625 = vpop.f32.mrb[0].mxu0
    %626 = vmatprep.mubr.f32.mxu0 0.0
    %627 = vmatmul.mubr.f32.gmra.mrb[0].mxu0 %v53
    %v628 = vpop.f32.mrb[0].mxu0
    %v629 = vadd.f32 0.0, %v628
    %v630 = vpop.f32.mrb[0].mxu0
    %631 = vmatprep.mubr.f32.mxu0 0.0
    %632 = vmatmul.mubr.f32.gmra.mrb[0].mxu0 %v56
    %v633 = vpop.f32.mrb[0].mxu0
    %v634 = vadd.f32 0.0, %v633
    %v635 = vpop.f32.mrb[0].mxu0
    %636 = vmatprep.mubr.f32.mxu0 0.0
    %637 = vmatmul.mubr.f32.gmra.mrb[0].mxu0 %v59
    %v638 = vpop.f32.mrb[0].mxu0
    %v639 = vadd.f32 0.0, %v638
    %v640 = vpop.f32.mrb[0].mxu0
    %641 = vmatprep.mubr.f32.mxu0 0.0
    %642 = vmatmul.mubr.f32.gmra.mrb[0].mxu0 %v62
    %v643 = vpop.f32.mrb[0].mxu0
    %v644 = vadd.f32 0.0, %v643
    %v645 = vpop.f32.mrb[0].mxu0
    %646 = vmatprep.mubr.f32.mxu0 0.0
    %647 = vmatmul.mubr.f32.gmra.mrb[0].mxu0 %v65
    %v648 = vpop.f32.mrb[0].mxu0
    %v649 = vadd.f32 0.0, %v648
    %v650 = vpop.f32.mrb[0].mxu0
    %651 = vmatprep.mubr.f32.mxu0 0.0
    %652 = vmatmul.mubr.f32.gmra.mrb[0].mxu0 %v68
    %v653 = vpop.f32.mrb[0].mxu0
    %v654 = vadd.f32 0.0, %v653
    %v655 = vpop.f32.mrb[0].mxu0
    %656 = vmatprep.mubr.f32.mxu0 0.0
    %657 = vmatmul.mubr.f32.gmra.mrb[0].mxu0 %v71
    %v658 = vpop.f32.mrb[0].mxu0
    %v659 = vadd.f32 0.0, %v658
    %v660 = vpop.f32.mrb[0].mxu0
    %661 = vdwg.mxu0
    %s662 = scalar_lea.vmem [#allocation2], 256
    %v663 = vld [vmem:[%s662] sm:$0xff]
    %v664 = vld [vmem:[%s662 + $0x8] sm:$0xff]
    %v665 = vld [vmem:[%s662 + $0x10] sm:$0xff]
    %v666 = vld [vmem:[%s662 + $0x18] sm:$0xff]
    %v667 = vld [vmem:[%s662 + $0x20] sm:$0xff]
    %v668 = vld [vmem:[%s662 + $0x28] sm:$0xff]
    %v669 = vld [vmem:[%s662 + $0x30] sm:$0xff]
    %v670 = vld [vmem:[%s662 + $0x38] sm:$0xff]
    %v671 = vld [vmem:[%s662 + $0x40] sm:$0xff]
    %v672 = vld [vmem:[%s662 + $0x48] sm:$0xff]
    %v673 = vld [vmem:[%s662 + $0x50] sm:$0xff]
    %v674 = vld [vmem:[%s662 + $0x58] sm:$0xff]
    %v675 = vld [vmem:[%s662 + $0x60] sm:$0xff]
    %v676 = vld [vmem:[%s662 + $0x68] sm:$0xff]
    %v677 = vld [vmem:[%s662 + $0x70] sm:$0xff]
    %v678 = vld [vmem:[%s662 + $0x78] sm:$0xff]
    %s679 = scalar_lea.vmem %s3, 2
    %v680 = vld [vmem:[%s679] sm:$0x1]
    %v682 = vlaneseq
    %v683 = vshrl.u32 %v682, 7
    %v684 = vsub.s32 0, %v683
    %v685 = vrot.slane %v680, %v684
    %687 = vmatprep.subr.mxu0 0.0
    %688 = vmatpush1.msra.mxu0 %v663
    %689 = vmatprep.subr.mxu0 0.0
    %690 = vmatpush1.msra.mxu0 %v664
    %691 = vmatprep.subr.mxu0 0.0
    %692 = vmatpush1.msra.mxu0 %v665
    %693 = vmatprep.subr.mxu0 0.0
    %694 = vmatpush1.msra.mxu0 %v666
    %695 = vmatprep.subr.mxu0 0.0
    %696 = vmatpush1.msra.mxu0 %v667
    %697 = vmatprep.subr.mxu0 0.0
    %698 = vmatpush1.msra.mxu0 %v668
    %699 = vmatprep.subr.mxu0 0.0
    %700 = vmatpush1.msra.mxu0 %v669
    %701 = vmatprep.subr.mxu0 0.0
    %702 = vmatpush1.msra.mxu0 %v670
    %703 = vmatprep.subr.mxu0 0.0
    %704 = vmatpush1.msra.mxu0 %v671
    %705 = vmatprep.subr.mxu0 0.0
    %706 = vmatpush1.msra.mxu0 %v672
    %707 = vmatprep.subr.mxu0 0.0
    %708 = vmatpush1.msra.mxu0 %v673
    %709 = vmatprep.subr.mxu0 0.0
    %710 = vmatpush1.msra.mxu0 %v674
    %711 = vmatprep.subr.mxu0 0.0
    %712 = vmatpush1.msra.mxu0 %v675
    %713 = vmatprep.subr.mxu0 0.0
    %714 = vmatpush1.msra.mxu0 %v676
    %715 = vmatprep.subr.mxu0 0.0
    %716 = vmatpush1.msra.mxu0 %v677
    %717 = vmatprep.subr.mxu0 0.0
    %718 = vmatpush1.msra.mxu0 %v678
    %719 = vmatprep.subr.mxu0 0.0
    %720 = vmatpush1.msra.mxu0 0.0
    %721 = vmatprep.subr.mxu0 0.0
    %722 = vmatpush1.msra.mxu0 0.0
    %723 = vmatprep.subr.mxu0 0.0
    %724 = vmatpush1.msra.mxu0 0.0
    %725 = vmatprep.subr.mxu0 0.0
    %726 = vmatpush1.msra.mxu0 0.0
    %727 = vmatprep.subr.mxu0 0.0
    %728 = vmatpush1.msra.mxu0 0.0
    %729 = vmatprep.subr.mxu0 0.0
    %730 = vmatpush1.msra.mxu0 0.0
    %731 = vmatprep.subr.mxu0 0.0
    %732 = vmatpush1.msra.mxu0 0.0
    %733 = vmatprep.subr.mxu0 0.0
    %734 = vmatpush1.msra.mxu0 0.0
    %735 = vmatprep.subr.mxu0 0.0
    %736 = vmatpush1.msra.mxu0 0.0
    %737 = vmatprep.subr.mxu0 0.0
    %738 = vmatpush1.msra.mxu0 0.0
    %739 = vmatprep.subr.mxu0 0.0
    %740 = vmatpush1.msra.mxu0 0.0
    %741 = vmatprep.subr.mxu0 0.0
    %742 = vmatpush1.msra.mxu0 0.0
    %743 = vmatprep.subr.mxu0 0.0
    %744 = vmatpush1.msra.mxu0 0.0
    %745 = vmatprep.subr.mxu0 0.0
    %746 = vmatpush1.msra.mxu0 0.0
    %747 = vmatprep.subr.mxu0 0.0
    %748 = vmatpush1.msra.mxu0 0.0
    %749 = vmatprep.subr.mxu0 0.0
    %750 = vmatpush1.msra.mxu0 0.0
    %751 = vmatprep.mubr.f32.mxu0 0.0
    %752 = vmatmul.mubr.f32.gmra.mrb[0].mxu0 %v624
    %v753 = vpop.f32.mrb[0].mxu0
    %v754 = vadd.f32 %v685, %v753
    %v755 = vpop.f32.mrb[0].mxu0
    %756 = vmatprep.mubr.f32.mxu0 0.0
    %757 = vmatmul.mubr.f32.gmra.mrb[0].mxu0 %v629
    %v758 = vpop.f32.mrb[0].mxu0
    %v759 = vadd.f32 %v685, %v758
    %v760 = vpop.f32.mrb[0].mxu0
    %761 = vmatprep.mubr.f32.mxu0 0.0
    %762 = vmatmul.mubr.f32.gmra.mrb[0].mxu0 %v634
    %v763 = vpop.f32.mrb[0].mxu0
    %v764 = vadd.f32 %v685, %v763
    %v765 = vpop.f32.mrb[0].mxu0
    %766 = vmatprep.mubr.f32.mxu0 0.0
    %767 = vmatmul.mubr.f32.gmra.mrb[0].mxu0 %v639
    %v768 = vpop.f32.mrb[0].mxu0
    %v769 = vadd.f32 %v685, %v768
    %v770 = vpop.f32.mrb[0].mxu0
    %771 = vmatprep.mubr.f32.mxu0 0.0
    %772 = vmatmul.mubr.f32.gmra.mrb[0].mxu0 %v644
    %v773 = vpop.f32.mrb[0].mxu0
    %v774 = vadd.f32 %v685, %v773
    %v775 = vpop.f32.mrb[0].mxu0
    %776 = vmatprep.mubr.f32.mxu0 0.0
    %777 = vmatmul.mubr.f32.gmra.mrb[0].mxu0 %v649
    %v778 = vpop.f32.mrb[0].mxu0
    %v779 = vadd.f32 %v685, %v778
    %v780 = vpop.f32.mrb[0].mxu0
    %781 = vmatprep.mubr.f32.mxu0 0.0
    %782 = vmatmul.mubr.f32.gmra.mrb[0].mxu0 %v654
    %v783 = vpop.f32.mrb[0].mxu0
    %v784 = vadd.f32 %v685, %v783
    %v785 = vpop.f32.mrb[0].mxu0
    %786 = vmatprep.mubr.f32.mxu0 0.0
    %787 = vmatmul.mubr.f32.gmra.mrb[0].mxu0 %v659
    %v788 = vpop.f32.mrb[0].mxu0
    %v789 = vadd.f32 %v685, %v788
    %v790 = vpop.f32.mrb[0].mxu0
    %791 = vdwg.mxu0
    %792 = vst [vmem:[#allocation5] sm:$0xff] %v754
    %793 = vst [vmem:[#allocation5 + $0x8] sm:$0xff] %v759
    %794 = vst [vmem:[#allocation5 + $0x10] sm:$0xff] %v764
    %795 = vst [vmem:[#allocation5 + $0x18] sm:$0xff] %v769
    %796 = vst [vmem:[#allocation5 + $0x20] sm:$0xff] %v774
    %797 = vst [vmem:[#allocation5 + $0x28] sm:$0xff] %v779
    %798 = vst [vmem:[#allocation5 + $0x30] sm:$0xff] %v784
    %799 = vst [vmem:[#allocation5 + $0x38] sm:$0xff] %v789
    // Predicated region
    $region22: #{graphsage_forward_padded.1} parent=1 // pred_check
      _
    $region23: #{graphsage_forward_padded.1} parent=1 // pred_check_branch
      %801 = sbr.rel (0) target = $region25
    $region24: #{graphsage_forward_padded.1} parent=1 // pred_region
      %s803 = ssub.s32 1024, 1024
      %804 = vsyncadd [#allocation4], %s803
      %s805 = sshll.u32 [#allocation5], 4
      %s806 = int_to_ptr.vmem [resolvable:$true] %s805
      %811 = dma.vmem_to_hbm [thread:$0]  %s806, 1024, %s4, [#allocation4], 128, 128, 8
    $region25: #{graphsage_forward_padded.1} parent=1 // pred_fallthru
      _
    // Predicated region
    $region26: #{graphsage_forward_padded.1} parent=1 // pred_check
      _
    $region27: #{graphsage_forward_padded.1} parent=1 // pred_check_branch
      %813 = sbr.rel (0) target = $region29
    $region28: #{graphsage_forward_padded.1} parent=1 // pred_region
      %814 = dma.done [#allocation4], 1024
    $region29: #{graphsage_forward_padded.1} parent=1 // pred_fallthru
      _
    %815 = vsyncpa [#allocation3], 1
    %816 = vsyncpa [#allocation4], 1

</llo_original>
